<compile_context>
chip_gen: v7x
topology: tpu7x:2x2x1
jax: 0.10.0
libtpu: 0.0.40
codegen_flags: <defaults>
</compile_context>

<pallas_src>
import functools

import jax
import jax.numpy as jnp
from jax.experimental import pallas as pl
from jax.experimental.pallas import tpu as pltpu


MAX_SPATIAL_BLOCK = 8192  # lanes of flattened H*W per grid step (multiple of 128)


def _choose_batch_tile(batch):
    """Largest proper divisor of `batch` that is a multiple of 8 (sublane-legal
    output block) so the leading grid axis can split across TensorCores.
    Falls back to the whole batch (full-dim block is always legal)."""
    for bt in range(batch // 2, 0, -1):
        if batch % bt == 0 and bt % 8 == 0:
            return bt
    return batch


def _encoder_kernel(x_ref, w_ref, sel_ref, b_ref, o_ref, acc_ref, *, tail_len):
    """Grid = (batch blocks ["parallel"], spatial blocks ["arbitrary"]).

    Each spatial step accumulates per-(batch, channel) sums of a wide lane
    slice of the flattened image into a resident (B_tile*C, 1) scratch.  On
    the last spatial step: mean (1/HW pre-folded into the weight) -> fc ->
    bias -> ReLU.  Dropout is identity (eval mode).
    """
    s = pl.program_id(1)
    n_s = pl.num_programs(1)

    @pl.when(s == 0)
    def _():
        acc_ref[...] = jnp.zeros_like(acc_ref)

    x = x_ref[...].astype(jnp.float32)            # (B_tile*C, S_BLOCK)
    if tail_len:  # static: only emitted when the last spatial block is ragged
        limit = jnp.where(s == n_s - 1, tail_len, x.shape[-1])
        lane = jax.lax.broadcasted_iota(jnp.int32, x.shape, 1)
        x = jnp.where(lane < limit, x, 0.0)
    acc_ref[...] += jnp.sum(x, axis=-1, keepdims=True)

    @pl.when(s == n_s - 1)
    def _():
        # (B_tile*C, 1) sums * per-row fc weights (1/HW folded in) -> (B_tile*C, E);
        # the 0/1 selector matmul sums each batch element's C rows -> (B_tile, E).
        contrib = acc_ref[...] * w_ref[...]
        fc = jnp.dot(sel_ref[...], contrib,
                     preferred_element_type=jnp.float32) + b_ref[...]
        # Encoder.forward: dropout(relu(fc)); dropout is identity in eval mode.
        o_ref[...] = jnp.maximum(fc, 0.0).astype(o_ref.dtype)


def encoder_forward(x_nchw, w_fold, bfc, *, max_spatial_block=MAX_SPATIAL_BLOCK):
    """Encoder: backbone stand-in (global avg pool + folded linear) -> fc ->
    ReLU -> Dropout (identity)."""
    assert max_spatial_block % 128 == 0
    B, C, H, W = x_nchw.shape
    HW = H * W
    E = w_fold.shape[1]

    # (B, C, H, W) -> (B*C, HW): contiguous reshape (no HBM copy); the kernel
    # sublane dim becomes B*C instead of C=3.
    x_flat = x_nchw.reshape(B * C, HW)

    b_tile = _choose_batch_tile(B)
    bc_tile = b_tile * C
    n_b = B // b_tile

    # Whole image in one block when it fits, otherwise large 128-aligned
    # blocks with an in-kernel mask on the ragged tail (no wrapper jnp.pad).
    s_block = HW if HW <= max_spatial_block else max_spatial_block
    n_s = pl.cdiv(HW, s_block)
    tail_len = HW % s_block  # 0 -> last block exactly full -> no mask emitted

    # Fold the global-average-pool 1/HW into the (init-time-cached) folded
    # weight and tile it per batch row so it broadcasts against the
    # (B_tile*C, 1) sums in the finalize.
    w_rows = jnp.tile(w_fold * (1.0 / float(HW)), (b_tile, 1))        # (bc_tile, E)
    # 0/1 selector that sums each batch element's C channel rows.
    sel = jnp.repeat(jnp.eye(b_tile, dtype=jnp.float32), C, axis=1)   # (b_tile, bc_tile)
    bias = bfc.reshape(1, E).astype(jnp.float32)

    kernel = functools.partial(_encoder_kernel, tail_len=tail_len)
    return pl.pallas_call(
        kernel,
        out_shape=jax.ShapeDtypeStruct((B, E), jnp.float32),
        grid_spec=pltpu.PrefetchScalarGridSpec(
            num_scalar_prefetch=0,
            grid=(n_b, n_s),
            in_specs=[
                # wide lane-contiguous slice of the flattened image
                pl.BlockSpec((bc_tile, s_block), lambda bi, s: (bi, s)),
                # folded fc weight / selector / bias stay resident
                pl.BlockSpec((bc_tile, E), lambda bi, s: (0, 0)),
                pl.BlockSpec((b_tile, bc_tile), lambda bi, s: (0, 0)),
                pl.BlockSpec((1, E), lambda bi, s: (0, 0)),
            ],
            # same block index across the spatial axis -> resident output,
            # written once on the final spatial step
            out_specs=pl.BlockSpec((b_tile, E), lambda bi, s: (bi, 0)),
            scratch_shapes=[pltpu.VMEM((bc_tile, 1), jnp.float32)],
        ),
        compiler_params=pltpu.CompilerParams(
            # batch axis may split across TensorCores (v7x megacore); the
            # spatial reduction axis carries the accumulator -> sequential.
            dimension_semantics=("parallel", "arbitrary"),
        ),
    )(x_flat, w_rows, sel, bias)


# -------------------------------- Parameters --------------------------------
def init_params(key, embed_size, in_channels=3, inception_features=2048):
    ks = jax.random.split(key, 3)
    s = 0.1
    # TODO(synk): deterministic linear stand-in for the InceptionV3 backbone.
    wb = s * jax.random.normal(ks[0], (in_channels, inception_features), jnp.float32)
    # self.model.fc = nn.Linear(2048, embed_size)  (weight stored transposed)
    wfc_t = s * jax.random.normal(ks[1], (inception_features, embed_size), jnp.float32)
    bfc = s * jax.random.normal(ks[2], (1, embed_size), jnp.float32)
    # Fold backbone projection and the replaced fc ONCE at init time (the
    # fold is exact only while the backbone stand-in is linear).
    w_fold = jnp.dot(wb, wfc_t)                                       # (C, E)
    return {"w_fold": w_fold, "bfc": bfc}


# ----------------------------------- Main ------------------------------------
if __name__ == "__main__":
    key = jax.random.PRNGKey(0)
    B, C, IMG = 2, 3, 16          # small synthetic NCHW RGB images
    E = 256                       # embed_size: multiple of 128 -> lane-dense output

    pkey, xkey = jax.random.split(key)
    params = init_params(pkey, E, in_channels=C)
    X = jax.random.normal(xkey, (B, C, IMG, IMG), jnp.float32)

    # max_spatial_block=128 here only to exercise the multi-step spatial
    # accumulation at this toy image size; real 299x299 inputs use the
    # default 8192-lane blocks.
    out = encoder_forward(X, params["w_fold"], params["bfc"], max_spatial_block=128)
    out = jax.block_until_ready(out)

    assert out.shape == (B, E), out.shape
    assert bool(jnp.all(jnp.isfinite(out)))
    assert bool(jnp.all(out >= 0.0))  # ReLU output must be non-negative

    # Pure-JAX reference (global avg pool -> folded fc -> ReLU).
    feats_ref = X.reshape(B, C, -1).mean(axis=-1)
    ref = jnp.maximum(feats_ref @ params["w_fold"] + params["bfc"], 0.0)
    assert bool(jnp.allclose(out, ref, atol=2e-2, rtol=2e-2))

    print("KERNEL_OK")
</pallas_src>

<mosaic_0001>
module attributes {stable_mosaic.version = 11 : i64} {
  func.func @_encoder_kernel(%arg0: i32, %arg1: i32, %arg2: memref<6x128xf32, #tpu.memory_space<vmem>>, %arg3: memref<6x256xf32, #tpu.memory_space<vmem>>, %arg4: memref<2x6xf32, #tpu.memory_space<vmem>>, %arg5: memref<1x256xf32, #tpu.memory_space<vmem>>, %arg6: memref<2x256xf32, #tpu.memory_space<vmem>>, %arg7: memref<6x1xf32, #tpu.memory_space<vmem>>) attributes {dimension_semantics = [#tpu.dimension_semantics<parallel>, #tpu.dimension_semantics<arbitrary>], iteration_bounds = array<i64: 1, 2>, scalar_prefetch = 0 : i64, scratch_operands = 1 : i64, tpu.core_type = #tpu.core_type<tc>, window_params = [{transform_indices = @transform_0, window_bounds = array<i64: 6, 128>}, {pipeline_mode = #tpu.pipeline_mode<synchronous>, transform_indices = @transform_1, window_bounds = array<i64: 6, 256>}, {pipeline_mode = #tpu.pipeline_mode<synchronous>, transform_indices = @transform_2, window_bounds = array<i64: 2, 6>}, {pipeline_mode = #tpu.pipeline_mode<synchronous>, transform_indices = @transform_3, window_bounds = array<i64: 1, 256>}, {transform_indices = @transform_4, window_bounds = array<i64: 2, 256>}]} {
    %c0_i32 = arith.constant 0 : i32
    %0 = arith.cmpi eq, %arg1, %c0_i32 : i32
    %1 = arith.extui %0 : i1 to i32
    %c0_i32_0 = arith.constant 0 : i32
    %2 = arith.cmpi ne, %1, %c0_i32_0 : i32
    scf.if %2 {
      %cst_7 = arith.constant 0.000000e+00 : f32
      %12 = vector.broadcast %cst_7 : f32 to vector<6x1xf32>
      %c0_8 = arith.constant 0 : index
      %c0_9 = arith.constant 0 : index
      %13 = vector.load %arg7[%c0_8, %c0_9] : memref<6x1xf32, #tpu.memory_space<vmem>>, vector<6x1xf32>
      tpu.vector_store %arg7[%c0_8, %c0_9], %12 {strides = array<i32>} : memref<6x1xf32, #tpu.memory_space<vmem>>, vector<6x1xf32>,
    } else {
    }
    %c0 = arith.constant 0 : index
    %c0_1 = arith.constant 0 : index
    %3 = vector.load %arg2[%c0, %c0_1] : memref<6x128xf32, #tpu.memory_space<vmem>>, vector<6x128xf32>
    %c0_2 = arith.constant 0 : index
    %c0_3 = arith.constant 0 : index
    %4 = vector.load %arg7[%c0_2, %c0_3] : memref<6x1xf32, #tpu.memory_space<vmem>>, vector<6x1xf32>
    %cst = arith.constant dense<0.000000e+00> : vector<6xf32>
    %5 = vector.multi_reduction <add>, %3, %cst [1] : vector<6x128xf32> to vector<6xf32>
    %6 = vector.shape_cast %5 : vector<6xf32> to vector<6x1xf32>
    %7 = arith.addf %4, %6 : vector<6x1xf32>
    %c0_4 = arith.constant 0 : index
    %c0_5 = arith.constant 0 : index
    %8 = vector.load %arg7[%c0_4, %c0_5] : memref<6x1xf32, #tpu.memory_space<vmem>>, vector<6x1xf32>
    tpu.vector_store %arg7[%c0_4, %c0_5], %7 {strides = array<i32>} : memref<6x1xf32, #tpu.memory_space<vmem>>, vector<6x1xf32>,
    %c1_i32 = arith.constant 1 : i32
    %9 = arith.cmpi eq, %arg1, %c1_i32 : i32
    %10 = arith.extui %9 : i1 to i32
    %c0_i32_6 = arith.constant 0 : i32
    %11 = arith.cmpi ne, %10, %c0_i32_6 : i32
    scf.if %11 {
      %c0_7 = arith.constant 0 : index
      %c0_8 = arith.constant 0 : index
      %12 = vector.load %arg7[%c0_7, %c0_8] : memref<6x1xf32, #tpu.memory_space<vmem>>, vector<6x1xf32>
      %c0_9 = arith.constant 0 : index
      %c0_10 = arith.constant 0 : index
      %13 = vector.load %arg3[%c0_9, %c0_10] : memref<6x256xf32, #tpu.memory_space<vmem>>, vector<6x256xf32>
      %14 = vector.broadcast %12 : vector<6x1xf32> to vector<6x256xf32>
      %15 = arith.mulf %14, %13 : vector<6x256xf32>
      %c0_11 = arith.constant 0 : index
      %c0_12 = arith.constant 0 : index
      %16 = vector.load %arg4[%c0_11, %c0_12] : memref<2x6xf32, #tpu.memory_space<vmem>>, vector<2x6xf32>
      %cst_13 = arith.constant dense<0.000000e+00> : vector<2x256xf32>
      %17 = tpu.matmul %16, %15, %cst_13 {dimension_numbers = #tpu.dot_dimension_numbers<[1], [0], [0], [1], [0, 0, 1, 1], [], []>} : vector<2x6xf32>, vector<6x256xf32>, vector<2x256xf32> -> vector<2x256xf32>
      %c0_14 = arith.constant 0 : index
      %c0_15 = arith.constant 0 : index
      %18 = vector.load %arg5[%c0_14, %c0_15] : memref<1x256xf32, #tpu.memory_space<vmem>>, vector<1x256xf32>
      %19 = vector.broadcast %18 : vector<1x256xf32> to vector<2x256xf32>
      %20 = arith.addf %17, %19 : vector<2x256xf32>
      %cst_16 = arith.constant 0.000000e+00 : f32
      %21 = vector.broadcast %cst_16 : f32 to vector<2x256xf32>
      %22 = arith.maximumf %20, %21 : vector<2x256xf32>
      %c0_17 = arith.constant 0 : index
      %c0_18 = arith.constant 0 : index
      %23 = vector.load %arg6[%c0_17, %c0_18] : memref<2x256xf32, #tpu.memory_space<vmem>>, vector<2x256xf32>
      tpu.vector_store %arg6[%c0_17, %c0_18], %22 {strides = array<i32>} : memref<2x256xf32, #tpu.memory_space<vmem>>, vector<2x256xf32>,
    } else {
    }
    return
  }
  func.func @transform_0(%arg0: i32, %arg1: i32) -> (i32, i32) {
    %c0_i32 = arith.constant 0 : i32
    return %arg0, %arg1 : i32, i32
  }
  func.func @transform_1(%arg0: i32, %arg1: i32) -> (i32, i32) {
    %c0_i32 = arith.constant 0 : i32
    %c0_i32_0 = arith.constant 0 : i32
    %c0_i32_1 = arith.constant 0 : i32
    return %c0_i32, %c0_i32_0 : i32, i32
  }
  func.func @transform_2(%arg0: i32, %arg1: i32) -> (i32, i32) {
    %c0_i32 = arith.constant 0 : i32
    %c0_i32_0 = arith.constant 0 : i32
    %c0_i32_1 = arith.constant 0 : i32
    return %c0_i32, %c0_i32_0 : i32, i32
  }
  func.func @transform_3(%arg0: i32, %arg1: i32) -> (i32, i32) {
    %c0_i32 = arith.constant 0 : i32
    %c0_i32_0 = arith.constant 0 : i32
    %c0_i32_1 = arith.constant 0 : i32
    return %c0_i32, %c0_i32_0 : i32, i32
  }
  func.func @transform_4(%arg0: i32, %arg1: i32) -> (i32, i32) {
    %c0_i32 = arith.constant 0 : i32
    %c0_i32_0 = arith.constant 0 : i32
    return %arg0, %c0_i32 : i32, i32
  }
}

</mosaic_0001>

<llo_original>
// kernel: tpu_custom_call.1
$region0: #{tpu_custom_call.1}
  #allocation0 [shape = 'u32[]', space=smem, size = 0x4, offset = 0x4, fixed_abs, tag = 'smem constant byte address 0x4 - core index']
  #allocation1 [shape = 'u32[144,128]{1,0:T(1,128)}', space=vmem, size = 0x12000, scoped, tag = 'internal scratch']
  #allocation2 [shape = 'f32[6,1]{1,0:T(8,128)}', space=vmem, size = 0x1000, scoped, tag = 'scratch operand']
  %s0 = inlined_call_operand.hbm [shape: f32[6,256], index: 0, kind: input, shape index: {}]
  %s1 = inlined_call_operand.hbm [shape: f32[6,256], index: 1, kind: input, shape index: {}]
  %s2 = inlined_call_operand.vmem [shape: f32[2,6], index: 2, kind: input, shape index: {}]
  %s3 = inlined_call_operand.vmem [shape: f32[1,256], index: 3, kind: input, shape index: {}]
  %s4 = inlined_call_operand.hbm [shape: f32[2,256], index: 4, kind: output, shape index: {}]
  %s5 = sld [smem:[#allocation0]]
  $region65: #{tpu_custom_call.1} parent=0
    _
  %s7 = ssub.s32 1, %s5
  %s8 = scalar_select 0, %s7, %s5
  $region1: #{tpu_custom_call.1} parent=0
    #allocation3 [shape = 'u8[8192]{0}', space=vmem, size = 0x2000, scoped, tag = 'input window, operand 0']
    #allocation4 [shape = 's32[2]{0}', space=sflag, size = 0x8, scoped, tag = 'scoped memory for tpu_custom_call.1']
    #allocation5 [shape = 's32[2]{0}', space=sflag, size = 0x8, scoped, tag = 'scoped memory for tpu_custom_call.1']
    #allocation6 [shape = 'u8[8192]{0}', space=vmem, size = 0x2000, scoped, tag = 'input window, operand 1, single buffered']
    #allocation7 [shape = 's32[1]{0}', space=sflag, size = 0x4, scoped, tag = 'scoped memory for tpu_custom_call.1']
    #allocation8 [shape = 'u8[2048]{0}', space=vmem, size = 0x800, scoped, tag = 'output window, operand 0, single buffered']
    %9 = vsyncpa [#allocation4], 0
    %s10 = scalar_lea.sflag [#allocation4], 1
    %11 = vsyncpa %s10, 0
    %12 = vsyncpa [#allocation7], 0
    %13 = vsyncpa [#allocation5], 0
    loop: start=0, step=1, limit=4
    $region2: #{tpu_custom_call.1} parent=1 // loop_pre_header
      _
    $region3: #{tpu_custom_call.1} parent=1 // loop_header
      %s15 = sphi 0, %s19
      %p16 = scmp.ge.s32.totalorder %s15, 4
      %s22 = sphi 0, %s34
      %s23 = sphi 0, %s30
      %s24 = sphi 0, %s22
      %s25 = sphi 0, %s23
      %s26 = sphi 0, %s24
      %s27 = sphi 0, %s25
      %s39 = sphi 0, %s41
      %s42 = sphi 0, %s39
      %s43 = sphi 0, %s42
      %s59 = sphi 0, %s43
      %s63 = sphi 0, %s63
      %s65 = sphi 0, %s63
      %s66 = sphi 0, %s65
      %s80 = sphi 0, %s66
      %s84 = sphi 0, %s84
      %s86 = sphi 0, %s84
      %s87 = sphi 0, %s86
      %s101 = sphi 0, %s87
      %s105 = sphi 0, %s105
      %s107 = sphi 0, %s105
      %s108 = sphi 0, %s107
      %s122 = sphi 0, %s108
      %s128 = sphi 0, %s130
      %s131 = sphi 0, %s128
      %s132 = sphi 0, %s131
      %s148 = sphi 0, %s132
    $region4: #{tpu_custom_call.1} parent=1 // loop_header_branch
      %18 = sbr.rel (%p16) target = $region8
    $region5: #{tpu_custom_call.1} parent=1 // loop_body
      %s20 = ssub.s32 %s15, 1
      %s21 = ssub.s32 %s15, 2
      %s28 = sadd.s32 1, %s23
      %p29 = scmp.ge.s32.totalorder %s28, 2
      %s30 = scalar_select %p29, 0, %s28
      %s31 = sadd.s32 1, %s22
      %s32 = scalar_select %p29, %s31, %s22
      %p33 = scmp.ge.s32.totalorder %s32, 1
      %s34 = scalar_select %p33, 0, %s32
      %s35 = ssub.s32 %s22, %s34
      %s36 = ssub.s32 %s23, %s30
      %s37 = sor.u32 %s35, %s36
      %p38 = scmp.eq.s32.totalorder %s37, 0
      %s40 = sadd.s32 %s39, 1
      %s41 = scalar_select %p38, %s39, %s40
      %p44 = pneg %p38
      %p45 = scmp.eq.s32.totalorder %s15, 1
      %p46 = por %p44, %p45
      %p47 = scmp.ne.s32.totalorder %s39, %s42
      %p48 = scmp.eq.s32.totalorder %s15, 0
      %p49 = por %p47, %p48
      %p50 = scmp.ne.s32.totalorder %s39, %s42
      %p51 = scmp.eq.s32.totalorder %s20, 1
      %p52 = por %p50, %p51
      %p53 = scmp.ne.s32.totalorder %s42, %s43
      %p54 = scmp.eq.s32.totalorder %s20, 0
      %p55 = por %p53, %p54
      %p56 = scmp.ne.s32.totalorder %s42, %s43
      %p57 = scmp.eq.s32.totalorder %s21, 1
      %p58 = por %p56, %p57
      %p60 = scmp.ne.s32.totalorder %s43, %s59
      %p61 = scmp.eq.s32.totalorder %s21, 0
      %p62 = por %p60, %p61
      %s64 = sadd.s32 %s63, 1
      %p67 = scmp.eq.s32.totalorder %s15, 1
      %p68 = scmp.ne.s32.totalorder %s63, %s65
      %p69 = scmp.eq.s32.totalorder %s15, 0
      %p70 = por %p68, %p69
      %p71 = scmp.ne.s32.totalorder %s63, %s65
      %p72 = scmp.eq.s32.totalorder %s20, 1
      %p73 = por %p71, %p72
      %p74 = scmp.ne.s32.totalorder %s65, %s66
      %p75 = scmp.eq.s32.totalorder %s20, 0
      %p76 = por %p74, %p75
      %p77 = scmp.ne.s32.totalorder %s65, %s66
      %p78 = scmp.eq.s32.totalorder %s21, 1
      %p79 = por %p77, %p78
      %p81 = scmp.ne.s32.totalorder %s66, %s80
      %p82 = scmp.eq.s32.totalorder %s21, 0
      %p83 = por %p81, %p82
      %s85 = sadd.s32 %s84, 1
      %p88 = scmp.eq.s32.totalorder %s15, 1
      %p89 = scmp.ne.s32.totalorder %s84, %s86
      %p90 = scmp.eq.s32.totalorder %s15, 0
      %p91 = por %p89, %p90
      %p92 = scmp.ne.s32.totalorder %s84, %s86
      %p93 = scmp.eq.s32.totalorder %s20, 1
      %p94 = por %p92, %p93
      %p95 = scmp.ne.s32.totalorder %s86, %s87
      %p96 = scmp.eq.s32.totalorder %s20, 0
      %p97 = por %p95, %p96
      %p98 = scmp.ne.s32.totalorder %s86, %s87
      %p99 = scmp.eq.s32.totalorder %s21, 1
      %p100 = por %p98, %p99
      %p102 = scmp.ne.s32.totalorder %s87, %s101
      %p103 = scmp.eq.s32.totalorder %s21, 0
      %p104 = por %p102, %p103
      %s106 = sadd.s32 %s105, 1
      %p109 = scmp.eq.s32.totalorder %s15, 1
      %p110 = scmp.ne.s32.totalorder %s105, %s107
      %p111 = scmp.eq.s32.totalorder %s15, 0
      %p112 = por %p110, %p111
      %p113 = scmp.ne.s32.totalorder %s105, %s107
      %p114 = scmp.eq.s32.totalorder %s20, 1
      %p115 = por %p113, %p114
      %p116 = scmp.ne.s32.totalorder %s107, %s108
      %p117 = scmp.eq.s32.totalorder %s20, 0
      %p118 = por %p116, %p117
      %p119 = scmp.ne.s32.totalorder %s107, %s108
      %p120 = scmp.eq.s32.totalorder %s21, 1
      %p121 = por %p119, %p120
      %p123 = scmp.ne.s32.totalorder %s108, %s122
      %p124 = scmp.eq.s32.totalorder %s21, 0
      %p125 = por %p123, %p124
      %s126 = ssub.s32 %s22, %s34
      %p127 = scmp.eq.s32.totalorder %s126, 0
      %s129 = sadd.s32 %s128, 1
      %s130 = scalar_select %p127, %s128, %s129
      %p133 = pneg %p127
      %p134 = scmp.eq.s32.totalorder %s15, 1
      %p135 = por %p133, %p134
      %p136 = scmp.ne.s32.totalorder %s128, %s131
      %p137 = scmp.eq.s32.totalorder %s15, 0
      %p138 = por %p136, %p137
      %p139 = scmp.ne.s32.totalorder %s128, %s131
      %p140 = scmp.eq.s32.totalorder %s20, 1
      %p141 = por %p139, %p140
      %p142 = scmp.ne.s32.totalorder %s131, %s132
      %p143 = scmp.eq.s32.totalorder %s20, 0
      %p144 = por %p142, %p143
      %p145 = scmp.ne.s32.totalorder %s131, %s132
      %p146 = scmp.eq.s32.totalorder %s21, 1
      %p147 = por %p145, %p146
      %p149 = scmp.ne.s32.totalorder %s132, %s148
      %p150 = scmp.eq.s32.totalorder %s21, 0
      %p151 = por %p149, %p150
      %p152 = scmp.le.s32.totalorder 1, %s15
      %p153 = scmp.lt.s32.totalorder %s15, 3
      %p154 = pnand %p152, %p153
      %p155 = pneg %p154
      // Predicated region
      $region9: #{tpu_custom_call.1} parent=5 // pred_check
        _
      $region10: #{tpu_custom_call.1} parent=5 // pred_check_branch
        %157 = sbr.rel (%p154) target = $region12
      $region11: #{tpu_custom_call.1} parent=5 // pred_region
        %s158 = ssub.s32 %s15, 1
        // Predicated region
        $region13: #{tpu_custom_call.1} parent=11 // pred_check
          %p159 = pneg %p76
        $region14: #{tpu_custom_call.1} parent=11 // pred_check_branch
          %161 = sbr.rel (%p159) target = $region16
        $region15: #{tpu_custom_call.1} parent=11 // pred_region
          %s163 = ssub.s32 256, 256
          %164 = vsyncadd [#allocation7], %s163
          %s166 = sshll.u32 [#allocation6], 4
          %s167 = int_to_ptr.vmem [resolvable:$true] %s166
          %169 = dma.hbm_to_vmem [thread:$0]  %s1, 256, %s167, [#allocation7]
        $region16: #{tpu_custom_call.1} parent=11 // pred_fallthru
          _
        // Predicated region
        $region17: #{tpu_custom_call.1} parent=11 // pred_check
          %p170 = pneg %p97
        $region18: #{tpu_custom_call.1} parent=11 // pred_check_branch
          %172 = sbr.rel (%p170) target = $region20
        $region19: #{tpu_custom_call.1} parent=11 // pred_region
          _
        $region20: #{tpu_custom_call.1} parent=11 // pred_fallthru
          _
        // Predicated region
        $region21: #{tpu_custom_call.1} parent=11 // pred_check
          %p173 = pneg %p118
        $region22: #{tpu_custom_call.1} parent=11 // pred_check_branch
          %175 = sbr.rel (%p173) target = $region24
        $region23: #{tpu_custom_call.1} parent=11 // pred_region
          _
        $region24: #{tpu_custom_call.1} parent=11 // pred_fallthru
          _
      $region12: #{tpu_custom_call.1} parent=5 // pred_fallthru
        _
      %p176 = scmp.lt.s32.totalorder %s15, 2
      // Predicated region
      $region25: #{tpu_custom_call.1} parent=5 // pred_check
        %p177 = pneg %p176
      $region26: #{tpu_custom_call.1} parent=5 // pred_check_branch
        %179 = sbr.rel (%p177) target = $region28
      $region27: #{tpu_custom_call.1} parent=5 // pred_region
        // Predicated region
        $region29: #{tpu_custom_call.1} parent=27 // pred_check
          %p180 = pneg %p49
        $region30: #{tpu_custom_call.1} parent=27 // pred_check_branch
          %182 = sbr.rel (%p180) target = $region32
        $region31: #{tpu_custom_call.1} parent=27 // pred_region
          %s183 = sand.u32 %s39, 1
          %s184 = scalar_lea.sflag [#allocation4], %s183
          %s185 = sand.u32 %s39, 1
          %s186 = smul.addr %s185, 8
          %s187 = scalar_lea.vmem [#allocation3], %s186
          %s189 = ssub.s32 128, 128
          %190 = vsyncadd %s184, %s189
          %s191 = smul.addr %s22, 2
          %s192 = sadd.s32 %s23, %s191
          %s193 = smul.addr %s192, 128
          %s194 = scalar_lea.hbm %s0, %s193
          %s196 = sshll.u32 %s187, 4
          %s197 = int_to_ptr.vmem [resolvable:$true] %s196
          %199 = dma.hbm_to_vmem [thread:$0]  %s194, 128, %s197, %s184
        $region32: #{tpu_custom_call.1} parent=27 // pred_fallthru
          _
      $region28: #{tpu_custom_call.1} parent=5 // pred_fallthru
        _
      %p200 = scmp.le.s32.totalorder 1, %s15
      %p201 = scmp.lt.s32.totalorder %s15, 3
      %p202 = pnand %p200, %p201
      %p203 = pneg %p202
      // Predicated region
      $region33: #{tpu_custom_call.1} parent=5 // pred_check
        _
      $region34: #{tpu_custom_call.1} parent=5 // pred_check_branch
        %205 = sbr.rel (%p202) target = $region36
      $region35: #{tpu_custom_call.1} parent=5 // pred_region
        %s206 = ssub.s32 %s15, 1
        %s207 = sand.u32 %s42, 1
        %s208 = scalar_lea.sflag [#allocation4], %s207
        %s209 = sand.u32 %s42, 1
        %s210 = smul.addr %s209, 8
        %s211 = scalar_lea.vmem [#allocation3], %s210
        // Predicated region
        $region37: #{tpu_custom_call.1} parent=35 // pred_check
          %p212 = pneg %p55
        $region38: #{tpu_custom_call.1} parent=35 // pred_check_branch
          %214 = sbr.rel (%p212) target = $region40
        $region39: #{tpu_custom_call.1} parent=35 // pred_region
          %215 = dma.done %s208, 128
        $region40: #{tpu_custom_call.1} parent=35 // pred_fallthru
          _
        // Predicated region
        $region41: #{tpu_custom_call.1} parent=35 // pred_check
          %p216 = pneg %p76
        $region42: #{tpu_custom_call.1} parent=35 // pred_check_branch
          %218 = sbr.rel (%p216) target = $region44
        $region43: #{tpu_custom_call.1} parent=35 // pred_region
          %219 = dma.done [#allocation7], 256
        $region44: #{tpu_custom_call.1} parent=35 // pred_fallthru
          _
        %s220 = sand.u32 %s42, 1
        %s221 = scalar_lea.sflag [#allocation4], %s220
        %s222 = sand.u32 %s42, 1
        %s223 = smul.addr %s222, 8
        %s224 = scalar_lea.vmem [#allocation3], %s223
        %p225 = pneg %p55
        %p226 = pneg %p52
        %p227 = pneg %p76
        %p228 = pneg %p73
        %p229 = pneg %p97
        %p230 = pneg %p94
        %p231 = pneg %p118
        %p232 = pneg %p115
        %p233 = pneg %p144
        %p234 = pneg %p141
        %p235 = scmp.eq.s32.totalorder %s25, 0
        // Predicated region
        $region45: #{tpu_custom_call.1} parent=35 // pred_check
          %p236 = pneg %p235
        $region46: #{tpu_custom_call.1} parent=35 // pred_check_branch
          %238 = sbr.rel (%p236) target = $region48
        $region47: #{tpu_custom_call.1} parent=35 // pred_region
          %vm239 = vcmask 5120
          %240 = vst.msk [vmem:[#allocation2] sm:$0x3f] %vm239, 0.0
        $region48: #{tpu_custom_call.1} parent=35 // pred_fallthru
          _
        %v241 = vld [vmem:[%s211] sm:$0x3f]
        %v242 = vld [vmem:[#allocation2] sm:$0x3f]
        %vm243 = vcmask 1045504
        %v244 = vsel %vm243, %v241, 0.0
        %245 = vadd.xlane.f32.xlu0 %v244
        %v246 = vpop.xlane.xlu0 %245
        %v247 = vadd.f32 %v242, %v246
        %vm248 = vcmask 5120
        %249 = vst.msk [vmem:[#allocation2] sm:$0x3f] %vm248, %v247
        %p250 = scmp.eq.s32.totalorder %s25, 1
        // Predicated region
        $region49: #{tpu_custom_call.1} parent=35 // pred_check
          %p251 = pneg %p250
        $region50: #{tpu_custom_call.1} parent=35 // pred_check_branch
          %253 = sbr.rel (%p251) target = $region52
        $region51: #{tpu_custom_call.1} parent=35 // pred_region
          %v254 = vld [vmem:[#allocation2] sm:$0x3f]
          %v255 = vld [vmem:[#allocation6] sm:$0x3f]
          %v256 = vld [vmem:[#allocation6 + $0x8] sm:$0x3f]
          %258 = vset.pattern.permute.xlu0 0
          %259 = vperm.xlu0 %258, %v254
          %v260 = vpop.permute.xlu0 %259
          %v262 = vmul.f32 %v260, %v255
          %v263 = vmul.f32 %v260, %v256
          %v264 = vld [vmem:[%s2] sm:$0x3]
          %v265 = vld [vmem:[%s3] sm:$0x3]
          %v267 = vlaneseq
          %v268 = vshrl.u32 %v267, 7
          %v269 = vsub.s32 0, %v268
          %v270 = vrot.slane %v265, %v269
          %v271 = vlaneseq
          %v272 = vshrl.u32 %v271, 7
          %v273 = vsub.s32 1, %v272
          %v274 = vrot.slane %v265, %v273
          %vm277 = vcmask 48128
          %v279 = vsel %vm277, %v264, 0
          %v282 = vsel %vm243, %v262, 0
          %v285 = vsel %vm243, %v263, 0
          %287 = vmatprep.subr.mxu0 %v285
          %288 = vmatpush1.msra.mxu0 %v282
          %289 = vmatprep.subr.mxu0 0.0
          %290 = vmatpush1.msra.mxu0 0.0
          %291 = vmatprep.subr.mxu0 0.0
          %292 = vmatpush1.msra.mxu0 0.0
          %293 = vmatprep.subr.mxu0 0.0
          %294 = vmatpush1.msra.mxu0 0.0
          %295 = vmatprep.subr.mxu0 0.0
          %296 = vmatpush1.msra.mxu0 0.0
          %297 = vmatprep.subr.mxu0 0.0
          %298 = vmatpush1.msra.mxu0 0.0
          %299 = vmatprep.subr.mxu0 0.0
          %300 = vmatpush1.msra.mxu0 0.0
          %301 = vmatprep.subr.mxu0 0.0
          %302 = vmatpush1.msra.mxu0 0.0
          %303 = vmatprep.subr.mxu0 0.0
          %304 = vmatpush1.msra.mxu0 0.0
          %305 = vmatprep.subr.mxu0 0.0
          %306 = vmatpush1.msra.mxu0 0.0
          %307 = vmatprep.subr.mxu0 0.0
          %308 = vmatpush1.msra.mxu0 0.0
          %309 = vmatprep.subr.mxu0 0.0
          %310 = vmatpush1.msra.mxu0 0.0
          %311 = vmatprep.subr.mxu0 0.0
          %312 = vmatpush1.msra.mxu0 0.0
          %313 = vmatprep.subr.mxu0 0.0
          %314 = vmatpush1.msra.mxu0 0.0
          %315 = vmatprep.subr.mxu0 0.0
          %316 = vmatpush1.msra.mxu0 0.0
          %317 = vmatprep.subr.mxu0 0.0
          %318 = vmatpush1.msra.mxu0 0.0
          %319 = vmatprep.subr.mxu0 0.0
          %320 = vmatpush1.msra.mxu0 0.0
          %321 = vmatprep.subr.mxu0 0.0
          %322 = vmatpush1.msra.mxu0 0.0
          %323 = vmatprep.subr.mxu0 0.0
          %324 = vmatpush1.msra.mxu0 0.0
          %325 = vmatprep.subr.mxu0 0.0
          %326 = vmatpush1.msra.mxu0 0.0
          %327 = vmatprep.subr.mxu0 0.0
          %328 = vmatpush1.msra.mxu0 0.0
          %329 = vmatprep.subr.mxu0 0.0
          %330 = vmatpush1.msra.mxu0 0.0
          %331 = vmatprep.subr.mxu0 0.0
          %332 = vmatpush1.msra.mxu0 0.0
          %333 = vmatprep.subr.mxu0 0.0
          %334 = vmatpush1.msra.mxu0 0.0
          %335 = vmatprep.subr.mxu0 0.0
          %336 = vmatpush1.msra.mxu0 0.0
          %337 = vmatprep.subr.mxu0 0.0
          %338 = vmatpush1.msra.mxu0 0.0
          %339 = vmatprep.subr.mxu0 0.0
          %340 = vmatpush1.msra.mxu0 0.0
          %341 = vmatprep.subr.mxu0 0.0
          %342 = vmatpush1.msra.mxu0 0.0
          %343 = vmatprep.subr.mxu0 0.0
          %344 = vmatpush1.msra.mxu0 0.0
          %345 = vmatprep.subr.mxu0 0.0
          %346 = vmatpush1.msra.mxu0 0.0
          %347 = vmatprep.subr.mxu0 0.0
          %348 = vmatpush1.msra.mxu0 0.0
          %349 = vmatprep.subr.mxu0 0.0
          %350 = vmatpush1.msra.mxu0 0.0
          %351 = vmatprep.mubr.f32.mxu0 0.0
          %352 = vmatmul.mubr.f32.gmra.mrb[0].mxu0 %v279
          %v353 = vpop.f32.mrb[0].mxu0
          %v354 = vadd.f32 %v270, %v353
          %v355 = vpop.f32.mrb[0].mxu0
          %v356 = vadd.f32 %v274, %v355
          %357 = vdwg.mxu0
          %v358 = vmax.f32 %v354, 0.0
          %v359 = vmax.f32 %v356, 0.0
          %v362 = vcombine.low %v358, %v359
          %v364 = vunpack.c.l.s4 1983009808
          %v365 = vunpack.c.0.s8 %v364
          %v366 = vlaneseq
          %v367 = vshrl.u32 %v366, 7
          %v368 = vsub.s32 %v365, %v367
          %v369 = vrot.slane %v362, %v368
          %371 = vst [vmem:[#allocation8] sm:$0xf] %v369
        $region52: #{tpu_custom_call.1} parent=35 // pred_fallthru
          _
        // Predicated region
        $region53: #{tpu_custom_call.1} parent=35 // pred_check
          %p372 = pneg %p141
        $region54: #{tpu_custom_call.1} parent=35 // pred_check_branch
          %374 = sbr.rel (%p372) target = $region56
        $region55: #{tpu_custom_call.1} parent=35 // pred_region
          %s376 = ssub.s32 64, 64
          %377 = vsyncadd [#allocation5], %s376
          %s378 = smul.addr %s24, 2
          %s379 = smul.addr %s378, 32
          %s380 = scalar_lea.hbm %s4, %s379
          %s382 = sshll.u32 [#allocation8], 4
          %s383 = int_to_ptr.vmem [resolvable:$true] %s382
          %385 = dma.vmem_to_hbm [thread:$0]  %s383, 64, %s380, [#allocation5]
        $region56: #{tpu_custom_call.1} parent=35 // pred_fallthru
          _
        // Predicated region
        $region57: #{tpu_custom_call.1} parent=35 // pred_check
          %p386 = pneg %p141
        $region58: #{tpu_custom_call.1} parent=35 // pred_check_branch
          %388 = sbr.rel (%p386) target = $region60
        $region59: #{tpu_custom_call.1} parent=35 // pred_region
          %389 = dma.done [#allocation5], 64
        $region60: #{tpu_custom_call.1} parent=35 // pred_fallthru
          _
      $region36: #{tpu_custom_call.1} parent=5 // pred_fallthru
        _
      %p390 = scmp.le.s32.totalorder 2, %s15
      // Predicated region
      $region61: #{tpu_custom_call.1} parent=5 // pred_check
        %p391 = pneg %p390
      $region62: #{tpu_custom_call.1} parent=5 // pred_check_branch
        %393 = sbr.rel (%p391) target = $region64
      $region63: #{tpu_custom_call.1} parent=5 // pred_region
        %s394 = ssub.s32 %s15, 2
      $region64: #{tpu_custom_call.1} parent=5 // pred_fallthru
        _
    $region6: #{tpu_custom_call.1} parent=1 // loop_footer
      %s19 = sadd.s32 1, %s15
    $region7: #{tpu_custom_call.1} parent=1 // loop_footer_branch
      %14 = sbr.rel target = $region3
    $region8: #{tpu_custom_call.1} parent=1 // loop_exit
      _
    %395 = vsyncpa [#allocation4], 1
    %s396 = scalar_lea.sflag [#allocation4], 1
    %397 = vsyncpa %s396, 1
    %398 = vsyncpa [#allocation7], 1
    %399 = vsyncpa [#allocation5], 1
    %s400 = scalar_lea.sflag [#allocation5], 1
    %401 = vsyncpa %s400, 1

</llo_original>
